<compile_context>
chip_gen: v5e
topology: v5e:2x2
jax: 0.10.0
libtpu: 0.0.40
codegen_flags: <defaults>
</compile_context>

<pallas_src>
import functools

import jax
import jax.numpy as jnp
from jax.experimental import pallas as pl
from jax.experimental.pallas import tpu as pltpu


def _qmixer_kernel(n_agents, hidden, state_dim,
                   x_ref, w_ref, r_ref, tail_ref, bb2b_ref, out_ref):
    A, H, S = n_agents, hidden, state_dim
    AH = A * H

    x = x_ref[...]                                   # (Bt, S+A+1)

    # Single fused matmul: columns = [w1 | q_exp | b2-hidden | w2 | b1],
    # biases already folded in via the ones column of x.
    z = jnp.dot(x, w_ref[...], preferred_element_type=jnp.float32)   # (Bt, 2AH+S+2H)

    w1_flat = jnp.abs(z[:, :AH])                     # (Bt, A*H)  == |w1_layer(states)|
    q_exp = z[:, AH:2 * AH]                          # (Bt, A*H)  == q @ E (no abs, no bias)
    hmid = jnp.maximum(z[:, 2 * AH:2 * AH + S], 0.0)                 # (Bt, S) ReLU hidden of b2
    w2v = jnp.abs(z[:, 2 * AH + S:2 * AH + S + H])   # (Bt, H)    == |w2_layer(states)|
    b1 = z[:, 2 * AH + S + H:2 * AH + S + 2 * H]     # (Bt, H)

    # bmm(q_values, w1): elementwise with |w1|, reduce agent blocks with constant R.
    acc = jnp.dot(q_exp * w1_flat, r_ref[...],
                  preferred_element_type=jnp.float32) + b1            # (Bt, H)

    # ELU(alpha=1); clamp exp argument so the unselected branch stays finite.
    out1 = jnp.where(acc > 0, acc, jnp.exp(jnp.minimum(acc, 0.0)) - 1.0)

    # Single merged tail reduction: lhs = [ones_H | wb2b] (1, H+S),
    # rhs = [out1*w2 | hmid] (Bt, H+S)  ->  lane-dense (1, Bt) output row.
    tail_rhs = jnp.concatenate([out1 * w2v, hmid], axis=1)            # (Bt, H+S)
    qtot = jnp.einsum('ok,bk->ob', tail_ref[...], tail_rhs,
                      preferred_element_type=jnp.float32)             # (1, Bt)
    out_ref[...] = (qtot + bb2b_ref[...]).astype(out_ref.dtype)


def prepare_mixer_constants(params, *, n_agents, hidden, state_dim,
                            compute_dtype=jnp.float32):
    """Build the fused kernel constants ONCE (hoisted out of the forward path)."""
    (w1, w1b, w2, w2b, wb1, bb1, wb2a, bb2a, wb2b, bb2b) = params
    A, H, S = n_agents, hidden, state_dim
    AH = A * H
    K = S + A + 1                         # [states | q | ones]
    N = 2 * AH + S + 2 * H                # [w1 | q_exp | b2-hidden | w2 | b1]

    w_fused = jnp.zeros((K, N), jnp.float32)
    # rows 0:S  <- state-conditioned weights
    w_fused = w_fused.at[:S, 0:AH].set(w1)
    w_fused = w_fused.at[:S, 2 * AH:2 * AH + S].set(wb2a)
    w_fused = w_fused.at[:S, 2 * AH + S:2 * AH + S + H].set(w2)
    w_fused = w_fused.at[:S, 2 * AH + S + H:].set(wb1)
    # rows S:S+A  <- q passthrough (agent expansion E), zero bias, no abs applied
    e_mat = jnp.repeat(jnp.eye(A, dtype=jnp.float32), H, axis=1)      # (A, A*H)
    w_fused = w_fused.at[S:S + A, AH:2 * AH].set(e_mat)
    # last row  <- biases (multiplied by the ones column of x)
    w_fused = w_fused.at[S + A, 0:AH].set(w1b.reshape(-1))
    w_fused = w_fused.at[S + A, 2 * AH:2 * AH + S].set(bb2a.reshape(-1))
    w_fused = w_fused.at[S + A, 2 * AH + S:2 * AH + S + H].set(w2b.reshape(-1))
    w_fused = w_fused.at[S + A, 2 * AH + S + H:].set(bb1.reshape(-1))

    r_mat = jnp.tile(jnp.eye(H, dtype=jnp.float32), (A, 1))           # (A*H, H)
    tail = jnp.concatenate([jnp.ones((1, H), jnp.float32),
                            wb2b.reshape(1, S)], axis=1)              # (1, H+S)
    return (w_fused.astype(compute_dtype), r_mat, tail, bb2b.reshape(1, 1))


def qmixer_forward(states, q_values, constants, *, n_agents, hidden, batch_tile=None):
    """states: (B, S), q_values: (B, 1, A) -> (B,) f32 (eval-mode dropout)."""
    B, S = states.shape
    A, H = n_agents, hidden
    w_fused, r_mat, tail, bb2b = constants
    K = S + A + 1
    N = w_fused.shape[1]

    # Bigger tiles cut per-step overhead; keep 128 as the minimum (lane-dense output),
    # cap at 1024 so large batches still give >=2 parallel tiles (v7x megacore).
    if batch_tile is None:
        batch_tile = min(1024, ((B + 127) // 128) * 128)
    assert batch_tile % 128 == 0, "batch_tile must be a multiple of 128"

    q2d = q_values.reshape(B, A)
    x = jnp.concatenate([states.astype(jnp.float32),
                         q2d.astype(jnp.float32),
                         jnp.ones((B, 1), jnp.float32)], axis=1)       # (B, S+A+1)
    x = x.astype(w_fused.dtype)

    num_tiles = pl.cdiv(B, batch_tile)
    B_pad = num_tiles * batch_tile
    if B_pad != B:
        x = jnp.pad(x, ((0, B_pad - B), (0, 0)))   # padded rows are all-zero -> harmless

    kernel = functools.partial(_qmixer_kernel, A, H, S)

    def const_spec(shape):
        return pl.BlockSpec(shape, lambda i: (0,) * len(shape))

    out = pl.pallas_call(
        kernel,
        out_shape=jax.ShapeDtypeStruct((1, B_pad), jnp.float32),
        grid_spec=pltpu.PrefetchScalarGridSpec(
            num_scalar_prefetch=0,
            grid=(num_tiles,),
            in_specs=[
                pl.BlockSpec((batch_tile, K), lambda i: (i, 0)),        # fused input
                const_spec((K, N)),                                     # fused hyper weights
                const_spec((A * H, H)),                                 # R (agent-block reduce)
                const_spec((1, H + S)),                                 # merged tail row
                const_spec((1, 1)),                                     # b2 final bias
            ],
            out_specs=pl.BlockSpec((1, batch_tile), lambda i: (0, i)),  # lane-dense row
        ),
        compiler_params=pltpu.CompilerParams(
            dimension_semantics=("parallel",)),
    )(x, w_fused, r_mat, tail, bb2b)

    return out.reshape(-1)[:B]


def init_params(key, state_shape, n_agents, hidden):
    """Deterministic synthetic parameters (PyTorch Linear shapes, pre-transposed to (in, out))."""
    S, A, H = state_shape, n_agents, hidden
    ks = jax.random.split(key, 10)

    def lin(k, fan_in, fan_out):
        bound = 1.0 / jnp.sqrt(fan_in)
        kw, kb = jax.random.split(k)
        w = jax.random.uniform(kw, (fan_in, fan_out), jnp.float32, -bound, bound)
        b = jax.random.uniform(kb, (1, fan_out), jnp.float32, -bound, bound)
        return w, b

    w1, w1b = lin(ks[0], S, A * H)     # w1_layer
    w2, w2b = lin(ks[1], S, H)         # w2_layer
    wb1, bb1 = lin(ks[2], S, H)        # b1
    wb2a, bb2a = lin(ks[3], S, S)      # b2[1]
    wb2b, bb2b = lin(ks[4], S, 1)      # b2[4]
    return (w1, w1b, w2, w2b, wb1, bb1, wb2a, bb2a, wb2b, bb2b)


def qmixer_reference(states, q_values, params, *, n_agents, hidden):
    """Pure-JAX reference mirroring the PyTorch forward (eval-mode dropout)."""
    (w1, w1b, w2, w2b, wb1, bb1, wb2a, bb2a, wb2b, bb2b) = params
    B = states.shape[0]
    A, H = n_agents, hidden
    w1v = jnp.abs(states @ w1 + w1b).reshape(B, A, H)
    w2v = jnp.abs(states @ w2 + w2b).reshape(B, H, 1)
    b1v = (states @ wb1 + bb1).reshape(B, 1, H)
    hmid = jnp.maximum(states @ wb2a + bb2a, 0.0)
    b2v = (hmid @ wb2b + bb2b).reshape(B, 1, 1)
    out1 = jax.nn.elu(jnp.matmul(q_values, w1v) + b1v)
    qtot = jnp.matmul(out1, w2v) + b2v
    return qtot.reshape(-1)


if __name__ == "__main__":
    # Small shapes consistent with QMIX on simple_spread-like settings.
    B = 16            # batch
    S = 64            # state_shape
    A = 4             # n_agents
    H = 32            # hidden_layer_dim

    key = jax.random.PRNGKey(0)
    k_params, k_states, k_q = jax.random.split(key, 3)

    params = init_params(k_params, S, A, H)
    states = jax.random.normal(k_states, (B, S), jnp.float32)
    q_values = jax.random.normal(k_q, (B, 1, A), jnp.float32)

    # Constants are built exactly once (hoisted out of the per-call path).
    constants = prepare_mixer_constants(params, n_agents=A, hidden=H, state_dim=S)
    constants = jax.block_until_ready(constants)

    qtot = qmixer_forward(states, q_values, constants, n_agents=A, hidden=H)
    qtot = jax.block_until_ready(qtot)

    ref = qmixer_reference(states, q_values, params, n_agents=A, hidden=H)
    assert qtot.shape == (B,)
    assert jnp.allclose(qtot, ref, atol=1e-4, rtol=1e-4), (qtot, ref)

    print("KERNEL_OK")
</pallas_src>

<mosaic_0001>
module attributes {stable_mosaic.version = 11 : i64} {
  func.func @_qmixer_kernel(%arg0: i32, %arg1: memref<128x69xf32, #tpu.memory_space<vmem>>, %arg2: memref<69x384xf32, #tpu.memory_space<vmem>>, %arg3: memref<128x32xf32, #tpu.memory_space<vmem>>, %arg4: memref<1x96xf32, #tpu.memory_space<vmem>>, %arg5: memref<1x1xf32, #tpu.memory_space<vmem>>, %arg6: memref<1x128xf32, #tpu.memory_space<vmem>>) attributes {dimension_semantics = [#tpu.dimension_semantics<parallel>], iteration_bounds = array<i64: 1>, scalar_prefetch = 0 : i64, scratch_operands = 0 : i64, tpu.core_type = #tpu.core_type<tc>, window_params = [{transform_indices = @transform_0, window_bounds = array<i64: 128, 69>}, {pipeline_mode = #tpu.pipeline_mode<synchronous>, transform_indices = @transform_1, window_bounds = array<i64: 69, 384>}, {pipeline_mode = #tpu.pipeline_mode<synchronous>, transform_indices = @transform_2, window_bounds = array<i64: 128, 32>}, {pipeline_mode = #tpu.pipeline_mode<synchronous>, transform_indices = @transform_3, window_bounds = array<i64: 1, 96>}, {pipeline_mode = #tpu.pipeline_mode<synchronous>, transform_indices = @transform_4, window_bounds = array<i64: 1, 1>}, {transform_indices = @transform_5, window_bounds = array<i64: 1, 128>}]} {
    %c0 = arith.constant 0 : index
    %c0_0 = arith.constant 0 : index
    %0 = vector.load %arg1[%c0, %c0_0] : memref<128x69xf32, #tpu.memory_space<vmem>>, vector<128x69xf32>
    %c0_1 = arith.constant 0 : index
    %c0_2 = arith.constant 0 : index
    %1 = vector.load %arg2[%c0_1, %c0_2] : memref<69x384xf32, #tpu.memory_space<vmem>>, vector<69x384xf32>
    %cst = arith.constant dense<0.000000e+00> : vector<128x384xf32>
    %2 = tpu.matmul %0, %1, %cst {dimension_numbers = #tpu.dot_dimension_numbers<[1], [0], [0], [1], [0, 0, 1, 1], [], []>} : vector<128x69xf32>, vector<69x384xf32>, vector<128x384xf32> -> vector<128x384xf32>
    %3 = vector.extract_strided_slice %2 {offsets = [0, 0], sizes = [128, 128], strides = [1, 1]} : vector<128x384xf32> to vector<128x128xf32>
    %4 = math.absf %3 : vector<128x128xf32>
    %5 = vector.extract_strided_slice %2 {offsets = [0, 128], sizes = [128, 128], strides = [1, 1]} : vector<128x384xf32> to vector<128x128xf32>
    %6 = vector.extract_strided_slice %2 {offsets = [0, 256], sizes = [128, 64], strides = [1, 1]} : vector<128x384xf32> to vector<128x64xf32>
    %cst_3 = arith.constant 0.000000e+00 : f32
    %7 = vector.broadcast %cst_3 : f32 to vector<128x64xf32>
    %8 = arith.maximumf %6, %7 : vector<128x64xf32>
    %9 = vector.extract_strided_slice %2 {offsets = [0, 320], sizes = [128, 32], strides = [1, 1]} : vector<128x384xf32> to vector<128x32xf32>
    %10 = math.absf %9 : vector<128x32xf32>
    %11 = vector.extract_strided_slice %2 {offsets = [0, 352], sizes = [128, 32], strides = [1, 1]} : vector<128x384xf32> to vector<128x32xf32>
    %12 = arith.mulf %5, %4 : vector<128x128xf32>
    %c0_4 = arith.constant 0 : index
    %c0_5 = arith.constant 0 : index
    %13 = vector.load %arg3[%c0_4, %c0_5] : memref<128x32xf32, #tpu.memory_space<vmem>>, vector<128x32xf32>
    %cst_6 = arith.constant dense<0.000000e+00> : vector<128x32xf32>
    %14 = tpu.matmul %12, %13, %cst_6 {dimension_numbers = #tpu.dot_dimension_numbers<[1], [0], [0], [1], [0, 0, 1, 1], [], []>} : vector<128x128xf32>, vector<128x32xf32>, vector<128x32xf32> -> vector<128x32xf32>
    %15 = arith.addf %14, %11 : vector<128x32xf32>
    %cst_7 = arith.constant 0.000000e+00 : f32
    %16 = vector.broadcast %cst_7 : f32 to vector<128x32xf32>
    %17 = arith.cmpf ogt, %15, %16 : vector<128x32xf32>
    %cst_8 = arith.constant 0.000000e+00 : f32
    %18 = vector.broadcast %cst_8 : f32 to vector<128x32xf32>
    %19 = arith.minimumf %15, %18 : vector<128x32xf32>
    %20 = math.exp %19 : vector<128x32xf32>
    %cst_9 = arith.constant 1.000000e+00 : f32
    %21 = vector.broadcast %cst_9 : f32 to vector<128x32xf32>
    %22 = arith.subf %20, %21 : vector<128x32xf32>
    %23 = arith.select %17, %15, %22 : vector<128x32xi1>, vector<128x32xf32>
    %24 = arith.mulf %23, %10 : vector<128x32xf32>
    %25 = tpu.concatenate %24, %8 in 1 : vector<128x32xf32>, vector<128x64xf32> -> vector<128x96xf32>
    %c0_10 = arith.constant 0 : index
    %c0_11 = arith.constant 0 : index
    %26 = vector.load %arg4[%c0_10, %c0_11] : memref<1x96xf32, #tpu.memory_space<vmem>>, vector<1x96xf32>
    "tpu.trace_start"() <{level = 10 : i32, message = "ok,bk->ob"}> : () -> ()
    %cst_12 = arith.constant dense<0.000000e+00> : vector<1x128xf32>
    %27 = tpu.matmul %26, %25, %cst_12 {dimension_numbers = #tpu.dot_dimension_numbers<[1], [1], [0], [0], [0, 0, 1, 0], [], []>} : vector<1x96xf32>, vector<128x96xf32>, vector<1x128xf32> -> vector<1x128xf32>
    "tpu.trace_stop"() : () -> ()
    %c0_13 = arith.constant 0 : index
    %c0_14 = arith.constant 0 : index
    %28 = vector.load %arg5[%c0_13, %c0_14] : memref<1x1xf32, #tpu.memory_space<vmem>>, vector<1x1xf32>
    %29 = vector.broadcast %28 : vector<1x1xf32> to vector<1x128xf32>
    %30 = arith.addf %27, %29 : vector<1x128xf32>
    %c0_15 = arith.constant 0 : index
    %c0_16 = arith.constant 0 : index
    %31 = vector.load %arg6[%c0_15, %c0_16] : memref<1x128xf32, #tpu.memory_space<vmem>>, vector<1x128xf32>
    tpu.vector_store %arg6[%c0_15, %c0_16], %30 {strides = array<i32>} : memref<1x128xf32, #tpu.memory_space<vmem>>, vector<1x128xf32>,
    return
  }
  func.func @transform_0(%arg0: i32) -> (i32, i32) {
    %c0_i32 = arith.constant 0 : i32
    %c0_i32_0 = arith.constant 0 : i32
    return %arg0, %c0_i32 : i32, i32
  }
  func.func @transform_1(%arg0: i32) -> (i32, i32) {
    %c0_i32 = arith.constant 0 : i32
    %c0_i32_0 = arith.constant 0 : i32
    %c0_i32_1 = arith.constant 0 : i32
    return %c0_i32, %c0_i32_0 : i32, i32
  }
  func.func @transform_2(%arg0: i32) -> (i32, i32) {
    %c0_i32 = arith.constant 0 : i32
    %c0_i32_0 = arith.constant 0 : i32
    %c0_i32_1 = arith.constant 0 : i32
    return %c0_i32, %c0_i32_0 : i32, i32
  }
  func.func @transform_3(%arg0: i32) -> (i32, i32) {
    %c0_i32 = arith.constant 0 : i32
    %c0_i32_0 = arith.constant 0 : i32
    %c0_i32_1 = arith.constant 0 : i32
    return %c0_i32, %c0_i32_0 : i32, i32
  }
  func.func @transform_4(%arg0: i32) -> (i32, i32) {
    %c0_i32 = arith.constant 0 : i32
    %c0_i32_0 = arith.constant 0 : i32
    %c0_i32_1 = arith.constant 0 : i32
    return %c0_i32, %c0_i32_0 : i32, i32
  }
  func.func @transform_5(%arg0: i32) -> (i32, i32) {
    %c0_i32 = arith.constant 0 : i32
    %c0_i32_0 = arith.constant 0 : i32
    return %c0_i32, %arg0 : i32, i32
  }
}

</mosaic_0001>

<llo_original>
// kernel: tpu_custom_call.1
$region0: #{tpu_custom_call.1}
  #allocation0 [shape = 'u32[]', space=smem, size = 0x4, offset = 0x4, fixed_abs, tag = 'smem constant byte address 0x4 - core index']
  #allocation1 [shape = 'u32[72,128]{1,0:T(1,128)}', space=vmem, size = 0x9000, scoped, tag = 'internal scratch']
  #allocation2 [shape = 'f32[1,1]{1,0:T(1,128)S(1)}', space=vmem, size = 0x200, scoped, tag = 'scoped memory for tpu_custom_call.1']
  %s0 = inlined_call_operand.vmem [shape: f32[128,69], index: 0, kind: input, shape index: {}]
  %s1 = inlined_call_operand.vmem [shape: f32[69,384], index: 1, kind: input, shape index: {}]
  %s2 = inlined_call_operand.vmem [shape: f32[128,32], index: 2, kind: input, shape index: {}]
  %s3 = inlined_call_operand.vmem [shape: f32[1,96], index: 3, kind: input, shape index: {}]
  %s4 = inlined_call_operand.<no memory space> [shape: f32[1,1], index: 4, kind: input, shape index: {}]
  %s5 = inlined_call_operand.hbm [shape: f32[1,128], index: 5, kind: output, shape index: {}]
  %s6 = sld [smem:[#allocation0]]
  $region30: #{tpu_custom_call.1} parent=0
    _
  %s8 = ssub.s32 1, %s6
  %s9 = scalar_select 0, %s8, %s6
  %v10 = vstv %s4
  %11 = vst [vmem:[#allocation2] sm:$0x1] %v10
  $region1: #{tpu_custom_call.1} parent=0
    #allocation3 [shape = 'u8[512]{0}', space=vmem, size = 0x400, scoped, tag = 'output window, operand 0, single buffered']
    #allocation4 [shape = 's32[1]{0}', space=sflag, size = 0x4, scoped, tag = 'scoped memory for tpu_custom_call.1']
    %12 = vsyncpa [#allocation4], 0
    // Predicated region
    $region2: #{tpu_custom_call.1} parent=1 // pred_check
      _
    $region3: #{tpu_custom_call.1} parent=1 // pred_check_branch
      %14 = sbr.rel (0) target = $region5
    $region4: #{tpu_custom_call.1} parent=1 // pred_region
      _
    $region5: #{tpu_custom_call.1} parent=1 // pred_fallthru
      _
    // Predicated region
    $region6: #{tpu_custom_call.1} parent=1 // pred_check
      _
    $region7: #{tpu_custom_call.1} parent=1 // pred_check_branch
      %16 = sbr.rel (0) target = $region9
    $region8: #{tpu_custom_call.1} parent=1 // pred_region
      _
    $region9: #{tpu_custom_call.1} parent=1 // pred_fallthru
      _
    // Predicated region
    $region10: #{tpu_custom_call.1} parent=1 // pred_check
      _
    $region11: #{tpu_custom_call.1} parent=1 // pred_check_branch
      %18 = sbr.rel (0) target = $region13
    $region12: #{tpu_custom_call.1} parent=1 // pred_region
      _
    $region13: #{tpu_custom_call.1} parent=1 // pred_fallthru
      _
    // Predicated region
    $region14: #{tpu_custom_call.1} parent=1 // pred_check
      _
    $region15: #{tpu_custom_call.1} parent=1 // pred_check_branch
      %20 = sbr.rel (0) target = $region17
    $region16: #{tpu_custom_call.1} parent=1 // pred_region
      _
    $region17: #{tpu_custom_call.1} parent=1 // pred_fallthru
      _
    // Predicated region
    $region18: #{tpu_custom_call.1} parent=1 // pred_check
      _
    $region19: #{tpu_custom_call.1} parent=1 // pred_check_branch
      %22 = sbr.rel (0) target = $region21
    $region20: #{tpu_custom_call.1} parent=1 // pred_region
      _
    $region21: #{tpu_custom_call.1} parent=1 // pred_fallthru
      _
    %v23 = vld [vmem:[%s0] sm:$0xff]
    %v24 = vld [vmem:[%s0 + $0x8] sm:$0xff]
    %v25 = vld [vmem:[%s0 + $0x10] sm:$0xff]
    %v26 = vld [vmem:[%s0 + $0x18] sm:$0xff]
    %v27 = vld [vmem:[%s0 + $0x20] sm:$0xff]
    %v28 = vld [vmem:[%s0 + $0x28] sm:$0xff]
    %v29 = vld [vmem:[%s0 + $0x30] sm:$0xff]
    %v30 = vld [vmem:[%s0 + $0x38] sm:$0xff]
    %v31 = vld [vmem:[%s0 + $0x40] sm:$0xff]
    %v32 = vld [vmem:[%s0 + $0x48] sm:$0xff]
    %v33 = vld [vmem:[%s0 + $0x50] sm:$0xff]
    %v34 = vld [vmem:[%s0 + $0x58] sm:$0xff]
    %v35 = vld [vmem:[%s0 + $0x60] sm:$0xff]
    %v36 = vld [vmem:[%s0 + $0x68] sm:$0xff]
    %v37 = vld [vmem:[%s0 + $0x70] sm:$0xff]
    %v38 = vld [vmem:[%s0 + $0x78] sm:$0xff]
    %v39 = vld [vmem:[%s1] sm:$0xff]
    %v40 = vld [vmem:[%s1 + $0x8] sm:$0xff]
    %v41 = vld [vmem:[%s1 + $0x10] sm:$0xff]
    %v42 = vld [vmem:[%s1 + $0x18] sm:$0xff]
    %v43 = vld [vmem:[%s1 + $0x20] sm:$0xff]
    %v44 = vld [vmem:[%s1 + $0x28] sm:$0xff]
    %v45 = vld [vmem:[%s1 + $0x30] sm:$0xff]
    %v46 = vld [vmem:[%s1 + $0x38] sm:$0xff]
    %v47 = vld [vmem:[%s1 + $0x40] sm:$0xff]
    %v48 = vld [vmem:[%s1 + $0x48] sm:$0xff]
    %v49 = vld [vmem:[%s1 + $0x50] sm:$0xff]
    %v50 = vld [vmem:[%s1 + $0x58] sm:$0xff]
    %v51 = vld [vmem:[%s1 + $0x60] sm:$0xff]
    %v52 = vld [vmem:[%s1 + $0x68] sm:$0xff]
    %v53 = vld [vmem:[%s1 + $0x70] sm:$0xff]
    %v54 = vld [vmem:[%s1 + $0x78] sm:$0xff]
    %v55 = vld [vmem:[%s1 + $0x80] sm:$0xff]
    %v56 = vld [vmem:[%s1 + $0x88] sm:$0xff]
    %v57 = vld [vmem:[%s1 + $0x90] sm:$0xff]
    %v58 = vld [vmem:[%s1 + $0x98] sm:$0xff]
    %v59 = vld [vmem:[%s1 + $0xa0] sm:$0xff]
    %v60 = vld [vmem:[%s1 + $0xa8] sm:$0xff]
    %v61 = vld [vmem:[%s1 + $0xb0] sm:$0xff]
    %v62 = vld [vmem:[%s1 + $0xb8] sm:$0xff]
    %v63 = vld [vmem:[%s1 + $0xc0] sm:$0x1f]
    %v64 = vld [vmem:[%s1 + $0xc8] sm:$0x1f]
    %v65 = vld [vmem:[%s1 + $0xd0] sm:$0x1f]
    %vm66 = vcmask 564224
    %v68 = vsel %vm66, %v23, 0
    %v71 = vsel %vm66, %v24, 0
    %v74 = vsel %vm66, %v25, 0
    %v77 = vsel %vm66, %v26, 0
    %v80 = vsel %vm66, %v27, 0
    %v83 = vsel %vm66, %v28, 0
    %v86 = vsel %vm66, %v29, 0
    %v89 = vsel %vm66, %v30, 0
    %v92 = vsel %vm66, %v31, 0
    %v95 = vsel %vm66, %v32, 0
    %v98 = vsel %vm66, %v33, 0
    %v101 = vsel %vm66, %v34, 0
    %v104 = vsel %vm66, %v35, 0
    %v107 = vsel %vm66, %v36, 0
    %v110 = vsel %vm66, %v37, 0
    %v113 = vsel %vm66, %v38, 0
    %vm115 = vcmask 1044480
    %v117 = vsel %vm115, %v63, 0
    %v120 = vsel %vm115, %v64, 0
    %v123 = vsel %vm115, %v65, 0
    %125 = vmatpush.msra.mxu0 0.0
    %126 = vmatpush.msra.mxu0 0.0
    %127 = vmatpush.msra.mxu0 0.0
    %128 = vmatpush.msra.mxu0 0.0
    %129 = vmatpush.msra.mxu0 0.0
    %130 = vmatpush.msra.mxu0 0.0
    %131 = vmatpush.msra.mxu0 0.0
    %132 = vmatpush.msra.mxu0 %v117
    %133 = vmatpush.msra.mxu0 %v60
    %134 = vmatpush.msra.mxu0 %v57
    %135 = vmatpush.msra.mxu0 %v54
    %136 = vmatpush.msra.mxu0 %v51
    %137 = vmatpush.msra.mxu0 %v48
    %138 = vmatpush.msra.mxu0 %v45
    %139 = vmatpush.msra.mxu0 %v42
    %140 = vmatpush.msra.mxu0 %v39
    %141 = vmatmul.f32.gmra.mxu0 %v68
    %v142 = vpop.f32.mrf.mxu0
    %v143 = vadd.f32 0.0, %v142
    %144 = vmatmul.f32.gmra.mxu0 %v71
    %v145 = vpop.f32.mrf.mxu0
    %v146 = vadd.f32 0.0, %v145
    %147 = vmatmul.f32.gmra.mxu0 %v74
    %v148 = vpop.f32.mrf.mxu0
    %v149 = vadd.f32 0.0, %v148
    %150 = vmatmul.f32.gmra.mxu0 %v77
    %v151 = vpop.f32.mrf.mxu0
    %v152 = vadd.f32 0.0, %v151
    %153 = vmatmul.f32.gmra.mxu0 %v80
    %v154 = vpop.f32.mrf.mxu0
    %v155 = vadd.f32 0.0, %v154
    %156 = vmatmul.f32.gmra.mxu0 %v83
    %v157 = vpop.f32.mrf.mxu0
    %v158 = vadd.f32 0.0, %v157
    %159 = vmatmul.f32.gmra.mxu0 %v86
    %v160 = vpop.f32.mrf.mxu0
    %v161 = vadd.f32 0.0, %v160
    %162 = vmatmul.f32.gmra.mxu0 %v89
    %v163 = vpop.f32.mrf.mxu0
    %v164 = vadd.f32 0.0, %v163
    %165 = vmatmul.f32.gmra.mxu0 %v92
    %v166 = vpop.f32.mrf.mxu0
    %v167 = vadd.f32 0.0, %v166
    %168 = vmatmul.f32.gmra.mxu0 %v95
    %v169 = vpop.f32.mrf.mxu0
    %v170 = vadd.f32 0.0, %v169
    %171 = vmatmul.f32.gmra.mxu0 %v98
    %v172 = vpop.f32.mrf.mxu0
    %v173 = vadd.f32 0.0, %v172
    %174 = vmatmul.f32.gmra.mxu0 %v101
    %v175 = vpop.f32.mrf.mxu0
    %v176 = vadd.f32 0.0, %v175
    %177 = vmatmul.f32.gmra.mxu0 %v104
    %v178 = vpop.f32.mrf.mxu0
    %v179 = vadd.f32 0.0, %v178
    %180 = vmatmul.f32.gmra.mxu0 %v107
    %v181 = vpop.f32.mrf.mxu0
    %v182 = vadd.f32 0.0, %v181
    %183 = vmatmul.f32.gmra.mxu0 %v110
    %v184 = vpop.f32.mrf.mxu0
    %v185 = vadd.f32 0.0, %v184
    %186 = vmatmul.f32.gmra.mxu0 %v113
    %v187 = vpop.f32.mrf.mxu0
    %v188 = vadd.f32 0.0, %v187
    %189 = vdwg.mxu0
    %190 = vmatpush.msra.mxu0 0.0
    %191 = vmatpush.msra.mxu0 0.0
    %192 = vmatpush.msra.mxu0 0.0
    %193 = vmatpush.msra.mxu0 0.0
    %194 = vmatpush.msra.mxu0 0.0
    %195 = vmatpush.msra.mxu0 0.0
    %196 = vmatpush.msra.mxu0 0.0
    %197 = vmatpush.msra.mxu0 %v120
    %198 = vmatpush.msra.mxu0 %v61
    %199 = vmatpush.msra.mxu0 %v58
    %200 = vmatpush.msra.mxu0 %v55
    %201 = vmatpush.msra.mxu0 %v52
    %202 = vmatpush.msra.mxu0 %v49
    %203 = vmatpush.msra.mxu0 %v46
    %204 = vmatpush.msra.mxu0 %v43
    %205 = vmatpush.msra.mxu0 %v40
    %206 = vmatmul.f32.gmra.mxu0 %v68
    %v207 = vpop.f32.mrf.mxu0
    %v208 = vadd.f32 0.0, %v207
    %209 = vmatmul.f32.gmra.mxu0 %v71
    %v210 = vpop.f32.mrf.mxu0
    %v211 = vadd.f32 0.0, %v210
    %212 = vmatmul.f32.gmra.mxu0 %v74
    %v213 = vpop.f32.mrf.mxu0
    %v214 = vadd.f32 0.0, %v213
    %215 = vmatmul.f32.gmra.mxu0 %v77
    %v216 = vpop.f32.mrf.mxu0
    %v217 = vadd.f32 0.0, %v216
    %218 = vmatmul.f32.gmra.mxu0 %v80
    %v219 = vpop.f32.mrf.mxu0
    %v220 = vadd.f32 0.0, %v219
    %221 = vmatmul.f32.gmra.mxu0 %v83
    %v222 = vpop.f32.mrf.mxu0
    %v223 = vadd.f32 0.0, %v222
    %224 = vmatmul.f32.gmra.mxu0 %v86
    %v225 = vpop.f32.mrf.mxu0
    %v226 = vadd.f32 0.0, %v225
    %227 = vmatmul.f32.gmra.mxu0 %v89
    %v228 = vpop.f32.mrf.mxu0
    %v229 = vadd.f32 0.0, %v228
    %230 = vmatmul.f32.gmra.mxu0 %v92
    %v231 = vpop.f32.mrf.mxu0
    %v232 = vadd.f32 0.0, %v231
    %233 = vmatmul.f32.gmra.mxu0 %v95
    %v234 = vpop.f32.mrf.mxu0
    %v235 = vadd.f32 0.0, %v234
    %236 = vmatmul.f32.gmra.mxu0 %v98
    %v237 = vpop.f32.mrf.mxu0
    %v238 = vadd.f32 0.0, %v237
    %239 = vmatmul.f32.gmra.mxu0 %v101
    %v240 = vpop.f32.mrf.mxu0
    %v241 = vadd.f32 0.0, %v240
    %242 = vmatmul.f32.gmra.mxu0 %v104
    %v243 = vpop.f32.mrf.mxu0
    %v244 = vadd.f32 0.0, %v243
    %245 = vmatmul.f32.gmra.mxu0 %v107
    %v246 = vpop.f32.mrf.mxu0
    %v247 = vadd.f32 0.0, %v246
    %248 = vmatmul.f32.gmra.mxu0 %v110
    %v249 = vpop.f32.mrf.mxu0
    %v250 = vadd.f32 0.0, %v249
    %251 = vmatmul.f32.gmra.mxu0 %v113
    %v252 = vpop.f32.mrf.mxu0
    %v253 = vadd.f32 0.0, %v252
    %254 = vdwg.mxu0
    %255 = vmatpush.msra.mxu0 0.0
    %256 = vmatpush.msra.mxu0 0.0
    %257 = vmatpush.msra.mxu0 0.0
    %258 = vmatpush.msra.mxu0 0.0
    %259 = vmatpush.msra.mxu0 0.0
    %260 = vmatpush.msra.mxu0 0.0
    %261 = vmatpush.msra.mxu0 0.0
    %262 = vmatpush.msra.mxu0 %v123
    %263 = vmatpush.msra.mxu0 %v62
    %264 = vmatpush.msra.mxu0 %v59
    %265 = vmatpush.msra.mxu0 %v56
    %266 = vmatpush.msra.mxu0 %v53
    %267 = vmatpush.msra.mxu0 %v50
    %268 = vmatpush.msra.mxu0 %v47
    %269 = vmatpush.msra.mxu0 %v44
    %270 = vmatpush.msra.mxu0 %v41
    %271 = vmatmul.f32.gmra.mxu0 %v68
    %v272 = vpop.f32.mrf.mxu0
    %v273 = vadd.f32 0.0, %v272
    %274 = vmatmul.f32.gmra.mxu0 %v71
    %v275 = vpop.f32.mrf.mxu0
    %v276 = vadd.f32 0.0, %v275
    %277 = vmatmul.f32.gmra.mxu0 %v74
    %v278 = vpop.f32.mrf.mxu0
    %v279 = vadd.f32 0.0, %v278
    %280 = vmatmul.f32.gmra.mxu0 %v77
    %v281 = vpop.f32.mrf.mxu0
    %v282 = vadd.f32 0.0, %v281
    %283 = vmatmul.f32.gmra.mxu0 %v80
    %v284 = vpop.f32.mrf.mxu0
    %v285 = vadd.f32 0.0, %v284
    %286 = vmatmul.f32.gmra.mxu0 %v83
    %v287 = vpop.f32.mrf.mxu0
    %v288 = vadd.f32 0.0, %v287
    %289 = vmatmul.f32.gmra.mxu0 %v86
    %v290 = vpop.f32.mrf.mxu0
    %v291 = vadd.f32 0.0, %v290
    %292 = vmatmul.f32.gmra.mxu0 %v89
    %v293 = vpop.f32.mrf.mxu0
    %v294 = vadd.f32 0.0, %v293
    %295 = vmatmul.f32.gmra.mxu0 %v92
    %v296 = vpop.f32.mrf.mxu0
    %v297 = vadd.f32 0.0, %v296
    %298 = vmatmul.f32.gmra.mxu0 %v95
    %v299 = vpop.f32.mrf.mxu0
    %v300 = vadd.f32 0.0, %v299
    %301 = vmatmul.f32.gmra.mxu0 %v98
    %v302 = vpop.f32.mrf.mxu0
    %v303 = vadd.f32 0.0, %v302
    %304 = vmatmul.f32.gmra.mxu0 %v101
    %v305 = vpop.f32.mrf.mxu0
    %v306 = vadd.f32 0.0, %v305
    %307 = vmatmul.f32.gmra.mxu0 %v104
    %v308 = vpop.f32.mrf.mxu0
    %v309 = vadd.f32 0.0, %v308
    %310 = vmatmul.f32.gmra.mxu0 %v107
    %v311 = vpop.f32.mrf.mxu0
    %v312 = vadd.f32 0.0, %v311
    %313 = vmatmul.f32.gmra.mxu0 %v110
    %v314 = vpop.f32.mrf.mxu0
    %v315 = vadd.f32 0.0, %v314
    %316 = vmatmul.f32.gmra.mxu0 %v113
    %v317 = vpop.f32.mrf.mxu0
    %v318 = vadd.f32 0.0, %v317
    %319 = vdwg.mxu0
    %v320 = vand.u32 2147483647, %v143
    %v321 = vand.u32 2147483647, %v146
    %v322 = vand.u32 2147483647, %v149
    %v323 = vand.u32 2147483647, %v152
    %v324 = vand.u32 2147483647, %v155
    %v325 = vand.u32 2147483647, %v158
    %v326 = vand.u32 2147483647, %v161
    %v327 = vand.u32 2147483647, %v164
    %v328 = vand.u32 2147483647, %v167
    %v329 = vand.u32 2147483647, %v170
    %v330 = vand.u32 2147483647, %v173
    %v331 = vand.u32 2147483647, %v176
    %v332 = vand.u32 2147483647, %v179
    %v333 = vand.u32 2147483647, %v182
    %v334 = vand.u32 2147483647, %v185
    %v335 = vand.u32 2147483647, %v188
    %v336 = vmax.f32 %v273, 0.0
    %v337 = vmax.f32 %v276, 0.0
    %v338 = vmax.f32 %v279, 0.0
    %v339 = vmax.f32 %v282, 0.0
    %v340 = vmax.f32 %v285, 0.0
    %v341 = vmax.f32 %v288, 0.0
    %v342 = vmax.f32 %v291, 0.0
    %v343 = vmax.f32 %v294, 0.0
    %v344 = vmax.f32 %v297, 0.0
    %v345 = vmax.f32 %v300, 0.0
    %v346 = vmax.f32 %v303, 0.0
    %v347 = vmax.f32 %v306, 0.0
    %v348 = vmax.f32 %v309, 0.0
    %v349 = vmax.f32 %v312, 0.0
    %v350 = vmax.f32 %v315, 0.0
    %v351 = vmax.f32 %v318, 0.0
    %v352 = vand.u32 2147483647, %v273
    %v353 = vand.u32 2147483647, %v276
    %v354 = vand.u32 2147483647, %v279
    %v355 = vand.u32 2147483647, %v282
    %v356 = vand.u32 2147483647, %v285
    %v357 = vand.u32 2147483647, %v288
    %v358 = vand.u32 2147483647, %v291
    %v359 = vand.u32 2147483647, %v294
    %v360 = vand.u32 2147483647, %v297
    %v361 = vand.u32 2147483647, %v300
    %v362 = vand.u32 2147483647, %v303
    %v363 = vand.u32 2147483647, %v306
    %v364 = vand.u32 2147483647, %v309
    %v365 = vand.u32 2147483647, %v312
    %v366 = vand.u32 2147483647, %v315
    %v367 = vand.u32 2147483647, %v318
    %v368 = vmul.f32 %v208, %v320
    %v369 = vmul.f32 %v211, %v321
    %v370 = vmul.f32 %v214, %v322
    %v371 = vmul.f32 %v217, %v323
    %v372 = vmul.f32 %v220, %v324
    %v373 = vmul.f32 %v223, %v325
    %v374 = vmul.f32 %v226, %v326
    %v375 = vmul.f32 %v229, %v327
    %v376 = vmul.f32 %v232, %v328
    %v377 = vmul.f32 %v235, %v329
    %v378 = vmul.f32 %v238, %v330
    %v379 = vmul.f32 %v241, %v331
    %v380 = vmul.f32 %v244, %v332
    %v381 = vmul.f32 %v247, %v333
    %v382 = vmul.f32 %v250, %v334
    %v383 = vmul.f32 %v253, %v335
    %v384 = vld [vmem:[%s2] sm:$0xff]
    %v385 = vld [vmem:[%s2 + $0x8] sm:$0xff]
    %v386 = vld [vmem:[%s2 + $0x10] sm:$0xff]
    %v387 = vld [vmem:[%s2 + $0x18] sm:$0xff]
    %v388 = vld [vmem:[%s2 + $0x20] sm:$0xff]
    %v389 = vld [vmem:[%s2 + $0x28] sm:$0xff]
    %v390 = vld [vmem:[%s2 + $0x30] sm:$0xff]
    %v391 = vld [vmem:[%s2 + $0x38] sm:$0xff]
    %v392 = vld [vmem:[%s2 + $0x40] sm:$0xff]
    %v393 = vld [vmem:[%s2 + $0x48] sm:$0xff]
    %v394 = vld [vmem:[%s2 + $0x50] sm:$0xff]
    %v395 = vld [vmem:[%s2 + $0x58] sm:$0xff]
    %v396 = vld [vmem:[%s2 + $0x60] sm:$0xff]
    %v397 = vld [vmem:[%s2 + $0x68] sm:$0xff]
    %v398 = vld [vmem:[%s2 + $0x70] sm:$0xff]
    %v399 = vld [vmem:[%s2 + $0x78] sm:$0xff]
    %416 = vrot.lane.b32.xlu0 %v273, 32
    %v417 = vpop.permute.xlu0 %416
    %418 = vrot.lane.b32.xlu0 %v276, 32
    %v419 = vpop.permute.xlu0 %418
    %420 = vrot.lane.b32.xlu0 %v279, 32
    %v421 = vpop.permute.xlu0 %420
    %422 = vrot.lane.b32.xlu0 %v282, 32
    %v423 = vpop.permute.xlu0 %422
    %424 = vrot.lane.b32.xlu0 %v285, 32
    %v425 = vpop.permute.xlu0 %424
    %426 = vrot.lane.b32.xlu0 %v288, 32
    %v427 = vpop.permute.xlu0 %426
    %428 = vrot.lane.b32.xlu0 %v291, 32
    %v429 = vpop.permute.xlu0 %428
    %430 = vrot.lane.b32.xlu0 %v294, 32
    %v431 = vpop.permute.xlu0 %430
    %432 = vrot.lane.b32.xlu0 %v297, 32
    %v433 = vpop.permute.xlu0 %432
    %434 = vrot.lane.b32.xlu0 %v300, 32
    %v435 = vpop.permute.xlu0 %434
    %436 = vrot.lane.b32.xlu0 %v303, 32
    %v437 = vpop.permute.xlu0 %436
    %438 = vrot.lane.b32.xlu0 %v306, 32
    %v439 = vpop.permute.xlu0 %438
    %440 = vrot.lane.b32.xlu0 %v309, 32
    %v441 = vpop.permute.xlu0 %440
    %442 = vrot.lane.b32.xlu0 %v312, 32
    %v443 = vpop.permute.xlu0 %442
    %444 = vrot.lane.b32.xlu0 %v315, 32
    %v445 = vpop.permute.xlu0 %444
    %446 = vrot.lane.b32.xlu0 %v318, 32
    %v447 = vpop.permute.xlu0 %446
    %464 = vmatpush.msra.mxu0 %v399
    %465 = vmatpush.msra.mxu0 %v398
    %466 = vmatpush.msra.mxu0 %v397
    %467 = vmatpush.msra.mxu0 %v396
    %468 = vmatpush.msra.mxu0 %v395
    %469 = vmatpush.msra.mxu0 %v394
    %470 = vmatpush.msra.mxu0 %v393
    %471 = vmatpush.msra.mxu0 %v392
    %472 = vmatpush.msra.mxu0 %v391
    %473 = vmatpush.msra.mxu0 %v390
    %474 = vmatpush.msra.mxu0 %v389
    %475 = vmatpush.msra.mxu0 %v388
    %476 = vmatpush.msra.mxu0 %v387
    %477 = vmatpush.msra.mxu0 %v386
    %478 = vmatpush.msra.mxu0 %v385
    %479 = vmatpush.msra.mxu0 %v384
    %480 = vmatmul.f32.gmra.mxu0 %v368
    %v481 = vpop.f32.mrf.mxu0
    %v482 = vadd.f32 %v417, %v481
    %483 = vmatmul.f32.gmra.mxu0 %v369
    %v484 = vpop.f32.mrf.mxu0
    %v485 = vadd.f32 %v419, %v484
    %486 = vmatmul.f32.gmra.mxu0 %v370
    %v487 = vpop.f32.mrf.mxu0
    %v488 = vadd.f32 %v421, %v487
    %489 = vmatmul.f32.gmra.mxu0 %v371
    %v490 = vpop.f32.mrf.mxu0
    %v491 = vadd.f32 %v423, %v490
    %492 = vmatmul.f32.gmra.mxu0 %v372
    %v493 = vpop.f32.mrf.mxu0
    %v494 = vadd.f32 %v425, %v493
    %495 = vmatmul.f32.gmra.mxu0 %v373
    %v496 = vpop.f32.mrf.mxu0
    %v497 = vadd.f32 %v427, %v496
    %498 = vmatmul.f32.gmra.mxu0 %v374
    %v499 = vpop.f32.mrf.mxu0
    %v500 = vadd.f32 %v429, %v499
    %501 = vmatmul.f32.gmra.mxu0 %v375
    %v502 = vpop.f32.mrf.mxu0
    %v503 = vadd.f32 %v431, %v502
    %504 = vmatmul.f32.gmra.mxu0 %v376
    %v505 = vpop.f32.mrf.mxu0
    %v506 = vadd.f32 %v433, %v505
    %507 = vmatmul.f32.gmra.mxu0 %v377
    %v508 = vpop.f32.mrf.mxu0
    %v509 = vadd.f32 %v435, %v508
    %510 = vmatmul.f32.gmra.mxu0 %v378
    %v511 = vpop.f32.mrf.mxu0
    %v512 = vadd.f32 %v437, %v511
    %513 = vmatmul.f32.gmra.mxu0 %v379
    %v514 = vpop.f32.mrf.mxu0
    %v515 = vadd.f32 %v439, %v514
    %516 = vmatmul.f32.gmra.mxu0 %v380
    %v517 = vpop.f32.mrf.mxu0
    %v518 = vadd.f32 %v441, %v517
    %519 = vmatmul.f32.gmra.mxu0 %v381
    %v520 = vpop.f32.mrf.mxu0
    %v521 = vadd.f32 %v443, %v520
    %522 = vmatmul.f32.gmra.mxu0 %v382
    %v523 = vpop.f32.mrf.mxu0
    %v524 = vadd.f32 %v445, %v523
    %525 = vmatmul.f32.gmra.mxu0 %v383
    %v526 = vpop.f32.mrf.mxu0
    %v527 = vadd.f32 %v447, %v526
    %528 = vdwg.mxu0
    %vm529 = vcmp.gt.f32.partialorder %v482, 0.0
    %vm530 = vcmp.gt.f32.partialorder %v485, 0.0
    %vm531 = vcmp.gt.f32.partialorder %v488, 0.0
    %vm532 = vcmp.gt.f32.partialorder %v491, 0.0
    %vm533 = vcmp.gt.f32.partialorder %v494, 0.0
    %vm534 = vcmp.gt.f32.partialorder %v497, 0.0
    %vm535 = vcmp.gt.f32.partialorder %v500, 0.0
    %vm536 = vcmp.gt.f32.partialorder %v503, 0.0
    %vm537 = vcmp.gt.f32.partialorder %v506, 0.0
    %vm538 = vcmp.gt.f32.partialorder %v509, 0.0
    %vm539 = vcmp.gt.f32.partialorder %v512, 0.0
    %vm540 = vcmp.gt.f32.partialorder %v515, 0.0
    %vm541 = vcmp.gt.f32.partialorder %v518, 0.0
    %vm542 = vcmp.gt.f32.partialorder %v521, 0.0
    %vm543 = vcmp.gt.f32.partialorder %v524, 0.0
    %vm544 = vcmp.gt.f32.partialorder %v527, 0.0
    %v545 = vmin.f32 %v482, 0.0
    %v546 = vmin.f32 %v485, 0.0
    %v547 = vmin.f32 %v488, 0.0
    %v548 = vmin.f32 %v491, 0.0
    %v549 = vmin.f32 %v494, 0.0
    %v550 = vmin.f32 %v497, 0.0
    %v551 = vmin.f32 %v500, 0.0
    %v552 = vmin.f32 %v503, 0.0
    %v553 = vmin.f32 %v506, 0.0
    %v554 = vmin.f32 %v509, 0.0
    %v555 = vmin.f32 %v512, 0.0
    %v556 = vmin.f32 %v515, 0.0
    %v557 = vmin.f32 %v518, 0.0
    %v558 = vmin.f32 %v521, 0.0
    %v559 = vmin.f32 %v524, 0.0
    %v560 = vmin.f32 %v527, 0.0
    %v561 = vmul.f32 %v545, 1.442695
    %v562 = vpow.pop %v561
    %v563 = vmul.f32 %v546, 1.442695
    %v564 = vpow.pop %v563
    %v565 = vmul.f32 %v547, 1.442695
    %v566 = vpow.pop %v565
    %v567 = vmul.f32 %v548, 1.442695
    %v568 = vpow.pop %v567
    %v569 = vmul.f32 %v549, 1.442695
    %v570 = vpow.pop %v569
    %v571 = vmul.f32 %v550, 1.442695
    %v572 = vpow.pop %v571
    %v573 = vmul.f32 %v551, 1.442695
    %v574 = vpow.pop %v573
    %v575 = vmul.f32 %v552, 1.442695
    %v576 = vpow.pop %v575
    %v577 = vmul.f32 %v553, 1.442695
    %v578 = vpow.pop %v577
    %v579 = vmul.f32 %v554, 1.442695
    %v580 = vpow.pop %v579
    %v581 = vmul.f32 %v555, 1.442695
    %v582 = vpow.pop %v581
    %v583 = vmul.f32 %v556, 1.442695
    %v584 = vpow.pop %v583
    %v585 = vmul.f32 %v557, 1.442695
    %v586 = vpow.pop %v585
    %v587 = vmul.f32 %v558, 1.442695
    %v588 = vpow.pop %v587
    %v589 = vmul.f32 %v559, 1.442695
    %v590 = vpow.pop %v589
    %v591 = vmul.f32 %v560, 1.442695
    %v592 = vpow.pop %v591
    %v593 = vsub.f32 %v562, 1.0
    %v594 = vsub.f32 %v564, 1.0
    %v595 = vsub.f32 %v566, 1.0
    %v596 = vsub.f32 %v568, 1.0
    %v597 = vsub.f32 %v570, 1.0
    %v598 = vsub.f32 %v572, 1.0
    %v599 = vsub.f32 %v574, 1.0
    %v600 = vsub.f32 %v576, 1.0
    %v601 = vsub.f32 %v578, 1.0
    %v602 = vsub.f32 %v580, 1.0
    %v603 = vsub.f32 %v582, 1.0
    %v604 = vsub.f32 %v584, 1.0
    %v605 = vsub.f32 %v586, 1.0
    %v606 = vsub.f32 %v588, 1.0
    %v607 = vsub.f32 %v590, 1.0
    %v608 = vsub.f32 %v592, 1.0
    %v609 = vsel %vm529, %v482, %v593
    %v610 = vsel %vm530, %v485, %v594
    %v611 = vsel %vm531, %v488, %v595
    %v612 = vsel %vm532, %v491, %v596
    %v613 = vsel %vm533, %v494, %v597
    %v614 = vsel %vm534, %v497, %v598
    %v615 = vsel %vm535, %v500, %v599
    %v616 = vsel %vm536, %v503, %v600
    %v617 = vsel %vm537, %v506, %v601
    %v618 = vsel %vm538, %v509, %v602
    %v619 = vsel %vm539, %v512, %v603
    %v620 = vsel %vm540, %v515, %v604
    %v621 = vsel %vm541, %v518, %v605
    %v622 = vsel %vm542, %v521, %v606
    %v623 = vsel %vm543, %v524, %v607
    %v624 = vsel %vm544, %v527, %v608
    %641 = vrot.lane.b32.xlu0 %v352, 64
    %v642 = vpop.permute.xlu0 %641
    %643 = vrot.lane.b32.xlu0 %v353, 64
    %v644 = vpop.permute.xlu0 %643
    %645 = vrot.lane.b32.xlu0 %v354, 64
    %v646 = vpop.permute.xlu0 %645
    %647 = vrot.lane.b32.xlu0 %v355, 64
    %v648 = vpop.permute.xlu0 %647
    %649 = vrot.lane.b32.xlu0 %v356, 64
    %v650 = vpop.permute.xlu0 %649
    %651 = vrot.lane.b32.xlu0 %v357, 64
    %v652 = vpop.permute.xlu0 %651
    %653 = vrot.lane.b32.xlu0 %v358, 64
    %v654 = vpop.permute.xlu0 %653
    %655 = vrot.lane.b32.xlu0 %v359, 64
    %v656 = vpop.permute.xlu0 %655
    %657 = vrot.lane.b32.xlu0 %v360, 64
    %v658 = vpop.permute.xlu0 %657
    %659 = vrot.lane.b32.xlu0 %v361, 64
    %v660 = vpop.permute.xlu0 %659
    %661 = vrot.lane.b32.xlu0 %v362, 64
    %v662 = vpop.permute.xlu0 %661
    %663 = vrot.lane.b32.xlu0 %v363, 64
    %v664 = vpop.permute.xlu0 %663
    %665 = vrot.lane.b32.xlu0 %v364, 64
    %v666 = vpop.permute.xlu0 %665
    %667 = vrot.lane.b32.xlu0 %v365, 64
    %v668 = vpop.permute.xlu0 %667
    %669 = vrot.lane.b32.xlu0 %v366, 64
    %v670 = vpop.permute.xlu0 %669
    %671 = vrot.lane.b32.xlu0 %v367, 64
    %v672 = vpop.permute.xlu0 %671
    %v689 = vmul.f32 %v609, %v642
    %v690 = vmul.f32 %v610, %v644
    %v691 = vmul.f32 %v611, %v646
    %v692 = vmul.f32 %v612, %v648
    %v693 = vmul.f32 %v613, %v650
    %v694 = vmul.f32 %v614, %v652
    %v695 = vmul.f32 %v615, %v654
    %v696 = vmul.f32 %v616, %v656
    %v697 = vmul.f32 %v617, %v658
    %v698 = vmul.f32 %v618, %v660
    %v699 = vmul.f32 %v619, %v662
    %v700 = vmul.f32 %v620, %v664
    %v701 = vmul.f32 %v621, %v666
    %v702 = vmul.f32 %v622, %v668
    %v703 = vmul.f32 %v623, %v670
    %v704 = vmul.f32 %v624, %v672
    %721 = vrot.lane.b32.xlu0 %v336, 32
    %v722 = vpop.permute.xlu0 %721
    %723 = vrot.lane.b32.xlu0 %v337, 32
    %v724 = vpop.permute.xlu0 %723
    %725 = vrot.lane.b32.xlu0 %v338, 32
    %v726 = vpop.permute.xlu0 %725
    %727 = vrot.lane.b32.xlu0 %v339, 32
    %v728 = vpop.permute.xlu0 %727
    %729 = vrot.lane.b32.xlu0 %v340, 32
    %v730 = vpop.permute.xlu0 %729
    %731 = vrot.lane.b32.xlu0 %v341, 32
    %v732 = vpop.permute.xlu0 %731
    %733 = vrot.lane.b32.xlu0 %v342, 32
    %v734 = vpop.permute.xlu0 %733
    %735 = vrot.lane.b32.xlu0 %v343, 32
    %v736 = vpop.permute.xlu0 %735
    %737 = vrot.lane.b32.xlu0 %v344, 32
    %v738 = vpop.permute.xlu0 %737
    %739 = vrot.lane.b32.xlu0 %v345, 32
    %v740 = vpop.permute.xlu0 %739
    %741 = vrot.lane.b32.xlu0 %v346, 32
    %v742 = vpop.permute.xlu0 %741
    %743 = vrot.lane.b32.xlu0 %v347, 32
    %v744 = vpop.permute.xlu0 %743
    %745 = vrot.lane.b32.xlu0 %v348, 32
    %v746 = vpop.permute.xlu0 %745
    %747 = vrot.lane.b32.xlu0 %v349, 32
    %v748 = vpop.permute.xlu0 %747
    %749 = vrot.lane.b32.xlu0 %v350, 32
    %v750 = vpop.permute.xlu0 %749
    %751 = vrot.lane.b32.xlu0 %v351, 32
    %v752 = vpop.permute.xlu0 %751
    %vm769 = vcmask 261120
    %v770 = vsel %vm769, %v689, %v722
    %v771 = vsel %vm769, %v690, %v724
    %v772 = vsel %vm769, %v691, %v726
    %v773 = vsel %vm769, %v692, %v728
    %v774 = vsel %vm769, %v693, %v730
    %v775 = vsel %vm769, %v694, %v732
    %v776 = vsel %vm769, %v695, %v734
    %v777 = vsel %vm769, %v696, %v736
    %v778 = vsel %vm769, %v697, %v738
    %v779 = vsel %vm769, %v698, %v740
    %v780 = vsel %vm769, %v699, %v742
    %v781 = vsel %vm769, %v700, %v744
    %v782 = vsel %vm769, %v701, %v746
    %v783 = vsel %vm769, %v702, %v748
    %v784 = vsel %vm769, %v703, %v750
    %v785 = vsel %vm769, %v704, %v752
    %v786 = vld [vmem:[%s3] sm:$0x1]
    %v787 = vld [vmem:[#allocation2] sm:$0x1]
    %789 = vset.pattern.permute.xlu0 0
    %790 = vperm.xlu0 %789, %v787
    %v791 = vpop.permute.xlu0 %790
    %v793 = vperm.slane %v791, 0
    %vm794 = vcmask 785408
    %v796 = vsel %vm794, %v786, 0
    %v799 = vsel %vm794, %v770, 0
    %v802 = vsel %vm794, %v771, 0
    %v805 = vsel %vm794, %v772, 0
    %v808 = vsel %vm794, %v773, 0
    %v811 = vsel %vm794, %v774, 0
    %v814 = vsel %vm794, %v775, 0
    %v817 = vsel %vm794, %v776, 0
    %v820 = vsel %vm794, %v777, 0
    %v823 = vsel %vm794, %v778, 0
    %v826 = vsel %vm794, %v779, 0
    %v829 = vsel %vm794, %v780, 0
    %v832 = vsel %vm794, %v781, 0
    %v835 = vsel %vm794, %v782, 0
    %v838 = vsel %vm794, %v783, 0
    %v841 = vsel %vm794, %v784, 0
    %v844 = vsel %vm794, %v785, 0
    %846 = vmatpush.xpose.msra.mxu0 %v844
    %847 = vmatpush.xpose.msra.mxu0 %v841
    %848 = vmatpush.xpose.msra.mxu0 %v838
    %849 = vmatpush.xpose.msra.mxu0 %v835
    %850 = vmatpush.xpose.msra.mxu0 %v832
    %851 = vmatpush.xpose.msra.mxu0 %v829
    %852 = vmatpush.xpose.msra.mxu0 %v826
    %853 = vmatpush.xpose.msra.mxu0 %v823
    %854 = vmatpush.xpose.msra.mxu0 %v820
    %855 = vmatpush.xpose.msra.mxu0 %v817
    %856 = vmatpush.xpose.msra.mxu0 %v814
    %857 = vmatpush.xpose.msra.mxu0 %v811
    %858 = vmatpush.xpose.msra.mxu0 %v808
    %859 = vmatpush.xpose.msra.mxu0 %v805
    %860 = vmatpush.xpose.msra.mxu0 %v802
    %861 = vmatpush.xpose.msra.mxu0 %v799
    %862 = vmatmul.f32.gmra.mxu0 %v796
    %v863 = vpop.f32.mrf.mxu0
    %v864 = vadd.f32 %v793, %v863
    %865 = vdwg.mxu0
    %866 = vst [vmem:[#allocation3] sm:$0x1] %v864
    // Predicated region
    $region22: #{tpu_custom_call.1} parent=1 // pred_check
      _
    $region23: #{tpu_custom_call.1} parent=1 // pred_check_branch
      %868 = sbr.rel (0) target = $region25
    $region24: #{tpu_custom_call.1} parent=1 // pred_region
      %870 = vsyncadd [#allocation4], 0
      %s872 = sshll.u32 [#allocation3], 4
      %s873 = int_to_ptr.vmem [resolvable:$true] %s872
      %s874 = sshll.u32 %s5, 4
      %s875 = int_to_ptr.hbm [resolvable:$true] %s874
      %877 = dma.vmem_to_hbm [thread:$0]  %s873, 16, %s875, [#allocation4]
    $region25: #{tpu_custom_call.1} parent=1 // pred_fallthru
      _
    // Predicated region
    $region26: #{tpu_custom_call.1} parent=1 // pred_check
      _
    $region27: #{tpu_custom_call.1} parent=1 // pred_check_branch
      %879 = sbr.rel (0) target = $region29
    $region28: #{tpu_custom_call.1} parent=1 // pred_region
      %881 = dma.done [#allocation4], 16
    $region29: #{tpu_custom_call.1} parent=1 // pred_fallthru
      _
    %882 = vsyncpa [#allocation4], 1

</llo_original>
